<compile_context>
chip_gen: v7x
topology: tpu7x:2x2x1
jax: 0.10.0
libtpu: 0.0.40
codegen_flags: <defaults>
</compile_context>

<pallas_src>
import functools

import jax
import jax.numpy as jnp
from jax.experimental import pallas as pl
from jax.experimental.pallas import tpu as pltpu

LANE = 128


def _round_up(n, m):
    return ((n + m - 1) // m) * m


def _linear_kernel(x_ref, w_ref, b_ref, o_ref):
    # x_ref: (TM, C) streamed tile; w_ref: (C, E_out) VMEM-resident, already
    # transposed in the wrapper so the MXU sees the canonical contraction;
    # b_ref: (1, E_out); o_ref: (TM, E_out).
    # TODO(synk): on v5e (no native f32 MXU path) consider casting the operands
    # to bf16 (keeping f32 accumulation) when numerics allow.
    acc = jnp.dot(x_ref[...], w_ref[...], preferred_element_type=jnp.float32)
    acc = acc + b_ref[...].astype(jnp.float32)
    o_ref[...] = acc.astype(o_ref.dtype)


def _vmem_budget():
    """(per-step tile budget, scoped vmem limit) derived from the chip generation."""
    try:
        cap = int(pltpu.get_tpu_info().vmem_capacity_bytes)
    except Exception:  # query unavailable -> be conservative (v7x numbers)
        cap = 64 << 20
    if cap >= (96 << 20):            # 128 MiB parts (v5e / v6e)
        return 56 << 20, 64 << 20
    return 24 << 20, 32 << 20        # 64 MiB parts (v7x)


def _pick_tm(m, c, e_out, x_item, out_item, resident_bytes, budget, pack, cap):
    """Largest M tile (multiple of `pack`, <= cap rows) whose double-buffered
    x/out tiles plus the resident weight/bias fit the per-generation budget."""
    if m <= pack:
        return m                                   # single full-extent block
    tm = max(pack, min(cap, (m // pack) * pack))

    def fits(t):
        streamed = 2 * t * (c * x_item + e_out * out_item)  # double-buffered in/out
        return streamed + resident_bytes <= budget

    while tm > pack and not fits(tm):
        tm = max(pack, (tm // 2) // pack * pack)
    # Prefer >= 2 grid steps on non-trivial inputs so the "parallel" axis can be
    # split across v7x's two TensorCores.
    if m > 4 * pack and pl.cdiv(m, tm) < 2:
        tm = max(pack, _round_up(pl.cdiv(m, 2), pack))
    return tm


def patch_embedding(x, weight, bias, *, single_buffer_weights=True):
    """Equivalent of PyTorch: nn.Linear(in_channels, embed_size)(x), x: [B, T, C].

    weight: [E, C] (PyTorch convention), bias: [E].  Returns [B, T, E].
    """
    assert x.ndim == 3
    B, T, C = x.shape
    E = weight.shape[0]
    assert weight.shape == (E, C)
    assert bias.shape == (E,)

    M = B * T
    x2d = x.reshape(M, C)                      # metadata-only reshape, no HBM pass
    out_dtype = jnp.promote_types(x.dtype, weight.dtype)

    # One-time wrapper transpose of the (small) weight -> canonical [C, E] RHS.
    w_t = weight.T
    # Pad the embed dim only when it is not already lane aligned.
    # TODO(synk): when E % 128 != 0, benchmark this padded-E + post-slice path
    # against an unpadded (tm, E) output block with masked stores.
    E_out = E if E % LANE == 0 else _round_up(E, LANE)
    if E_out != E:
        w_t = jnp.pad(w_t, ((0, 0), (0, E_out - E)))
        bias = jnp.pad(bias, (0, E_out - E))
    b2d = bias.reshape(1, E_out)

    x_item = jnp.dtype(x.dtype).itemsize
    w_item = jnp.dtype(w_t.dtype).itemsize
    out_item = jnp.dtype(out_dtype).itemsize

    budget, vmem_limit = _vmem_budget()
    w_buffers = 1 if single_buffer_weights else 2
    resident = w_buffers * (C * E_out + E_out) * w_item
    # bf16 packs 2 rows per sublane -> M tiles must be multiples of 16 (32 for int8).
    pack = max(8, 32 // x_item)
    cap = 1024 if budget <= (32 << 20) else 2048
    tm = _pick_tm(M, C, E_out, x_item, out_item, resident, budget, pack, cap)
    grid_m = pl.cdiv(M, tm)                    # ragged last block handled by Pallas

    resident_kwargs = (
        dict(pipeline_mode=pl.Buffered(1)) if single_buffer_weights else {}
    )
    in_specs = [
        pl.BlockSpec((tm, C), lambda i: (i, 0)),                         # streamed x
        pl.BlockSpec((C, E_out), lambda i: (0, 0), **resident_kwargs),   # resident W^T
        pl.BlockSpec((1, E_out), lambda i: (0, 0), **resident_kwargs),   # resident bias
    ]

    cost = pl.CostEstimate(
        flops=2 * M * C * E_out,
        transcendentals=0,
        bytes_accessed=(M * C * x_item + (C * E_out + E_out) * w_item
                        + M * E_out * out_item),
    )

    out2d = pl.pallas_call(
        _linear_kernel,
        out_shape=jax.ShapeDtypeStruct((M, E_out), out_dtype),
        grid_spec=pl.GridSpec(
            grid=(grid_m,),
            in_specs=in_specs,
            out_specs=pl.BlockSpec((tm, E_out), lambda i: (i, 0)),
        ),
        compiler_params=pltpu.CompilerParams(
            dimension_semantics=("parallel",),
            vmem_limit_bytes=vmem_limit,
        ),
        cost_estimate=cost,
    )(x2d, w_t, b2d)

    if E_out != E:
        out2d = out2d[:, :E]
    return out2d.reshape(B, T, E)

    # TODO(synk): for very large C, add a K grid axis with a VMEM f32 accumulator
    # instead of keeping the full (C, E_out) weight block resident.


if __name__ == "__main__":
    # Small shapes consistent with the module: B=2, T=8, C=4, E=32.
    B, T, C, E = 2, 8, 4, 32

    key = jax.random.PRNGKey(0)
    kx, kw, kb = jax.random.split(key, 3)

    x = jax.random.normal(kx, (B, T, C), dtype=jnp.float32)

    # Deterministic param init mimicking nn.Linear's uniform(-1/sqrt(C), 1/sqrt(C)).
    bound = 1.0 / (C ** 0.5)
    weight = jax.random.uniform(kw, (E, C), dtype=jnp.float32,
                                minval=-bound, maxval=bound)
    bias = jax.random.uniform(kb, (E,), dtype=jnp.float32,
                              minval=-bound, maxval=bound)

    try:
        fwd = jax.jit(functools.partial(patch_embedding, single_buffer_weights=True))
        out = jax.block_until_ready(fwd(x, weight, bias))
    except Exception:
        # Fallback in case this build rejects pl.Buffered(1) on the main pipeline:
        # plain double-buffered resident weight (identical math, slightly more VMEM).
        fwd = jax.jit(functools.partial(patch_embedding, single_buffer_weights=False))
        out = jax.block_until_ready(fwd(x, weight, bias))

    # Correctness check against plain-JAX reference of the same math.
    ref = x @ weight.T + bias
    assert out.shape == (B, T, E)
    assert jnp.allclose(out, ref, atol=1e-5, rtol=1e-5)

    print("KERNEL_OK")
</pallas_src>

<mosaic_0001>
module attributes {stable_mosaic.version = 11 : i64} {
  func.func @_linear_kernel(%arg0: i32, %arg1: memref<16x4xf32, #tpu.memory_space<vmem>>, %arg2: memref<4x128xf32, #tpu.memory_space<vmem>>, %arg3: memref<1x128xf32, #tpu.memory_space<vmem>>, %arg4: memref<16x128xf32, #tpu.memory_space<vmem>>) attributes {dimension_semantics = [#tpu.dimension_semantics<parallel>], iteration_bounds = array<i64: 1>, scalar_prefetch = 0 : i64, scratch_operands = 0 : i64, tpu.core_type = #tpu.core_type<tc>, window_params = [{transform_indices = @transform_0, window_bounds = array<i64: 16, 4>}, {pipeline_mode = #tpu.pipeline_mode<synchronous>, transform_indices = @transform_1, window_bounds = array<i64: 4, 128>}, {pipeline_mode = #tpu.pipeline_mode<synchronous>, transform_indices = @transform_2, window_bounds = array<i64: 1, 128>}, {transform_indices = @transform_3, window_bounds = array<i64: 16, 128>}]} {
    %c0 = arith.constant 0 : index
    %c0_0 = arith.constant 0 : index
    %0 = vector.load %arg1[%c0, %c0_0] : memref<16x4xf32, #tpu.memory_space<vmem>>, vector<16x4xf32>
    %c0_1 = arith.constant 0 : index
    %c0_2 = arith.constant 0 : index
    %1 = vector.load %arg2[%c0_1, %c0_2] : memref<4x128xf32, #tpu.memory_space<vmem>>, vector<4x128xf32>
    %cst = arith.constant dense<0.000000e+00> : vector<16x128xf32>
    %2 = tpu.matmul %0, %1, %cst {dimension_numbers = #tpu.dot_dimension_numbers<[1], [0], [0], [1], [0, 0, 1, 1], [], []>} : vector<16x4xf32>, vector<4x128xf32>, vector<16x128xf32> -> vector<16x128xf32>
    %c0_3 = arith.constant 0 : index
    %c0_4 = arith.constant 0 : index
    %3 = vector.load %arg3[%c0_3, %c0_4] : memref<1x128xf32, #tpu.memory_space<vmem>>, vector<1x128xf32>
    %4 = vector.broadcast %3 : vector<1x128xf32> to vector<16x128xf32>
    %5 = arith.addf %2, %4 : vector<16x128xf32>
    %c0_5 = arith.constant 0 : index
    %c0_6 = arith.constant 0 : index
    %6 = vector.load %arg4[%c0_5, %c0_6] : memref<16x128xf32, #tpu.memory_space<vmem>>, vector<16x128xf32>
    tpu.vector_store %arg4[%c0_5, %c0_6], %5 {strides = array<i32>} : memref<16x128xf32, #tpu.memory_space<vmem>>, vector<16x128xf32>,
    return
  }
  func.func @transform_0(%arg0: i32) -> (i32, i32) {
    %c0_i32 = arith.constant 0 : i32
    %c0_i32_0 = arith.constant 0 : i32
    return %arg0, %c0_i32 : i32, i32
  }
  func.func @transform_1(%arg0: i32) -> (i32, i32) {
    %c0_i32 = arith.constant 0 : i32
    %c0_i32_0 = arith.constant 0 : i32
    %c0_i32_1 = arith.constant 0 : i32
    return %c0_i32, %c0_i32_0 : i32, i32
  }
  func.func @transform_2(%arg0: i32) -> (i32, i32) {
    %c0_i32 = arith.constant 0 : i32
    %c0_i32_0 = arith.constant 0 : i32
    %c0_i32_1 = arith.constant 0 : i32
    return %c0_i32, %c0_i32_0 : i32, i32
  }
  func.func @transform_3(%arg0: i32) -> (i32, i32) {
    %c0_i32 = arith.constant 0 : i32
    %c0_i32_0 = arith.constant 0 : i32
    return %arg0, %c0_i32 : i32, i32
  }
}

module attributes {stable_mosaic.version = 11 : i64} {
  func.func @_linear_kernel(%arg0: i32, %arg1: memref<16x4xf32, #tpu.memory_space<vmem>>, %arg2: memref<4x128xf32, #tpu.memory_space<vmem>>, %arg3: memref<1x128xf32, #tpu.memory_space<vmem>>, %arg4: memref<16x128xf32, #tpu.memory_space<vmem>>) attributes {dimension_semantics = [#tpu.dimension_semantics<parallel>], iteration_bounds = array<i64: 1>, scalar_prefetch = 0 : i64, scratch_operands = 0 : i64, tpu.core_type = #tpu.core_type<tc>, window_params = [{transform_indices = @transform_0, window_bounds = array<i64: 16, 4>}, {pipeline_mode = #tpu.pipeline_mode<synchronous>, transform_indices = @transform_1, window_bounds = array<i64: 4, 128>}, {pipeline_mode = #tpu.pipeline_mode<synchronous>, transform_indices = @transform_2, window_bounds = array<i64: 1, 128>}, {transform_indices = @transform_3, window_bounds = array<i64: 16, 128>}]} {
    %c0 = arith.constant 0 : index
    %c0_0 = arith.constant 0 : index
    %0 = vector.load %arg1[%c0, %c0_0] : memref<16x4xf32, #tpu.memory_space<vmem>>, vector<16x4xf32>
    %c0_1 = arith.constant 0 : index
    %c0_2 = arith.constant 0 : index
    %1 = vector.load %arg2[%c0_1, %c0_2] : memref<4x128xf32, #tpu.memory_space<vmem>>, vector<4x128xf32>
    %cst = arith.constant dense<0.000000e+00> : vector<16x128xf32>
    %2 = tpu.matmul %0, %1, %cst {dimension_numbers = #tpu.dot_dimension_numbers<[1], [0], [0], [1], [0, 0, 1, 1], [], []>} : vector<16x4xf32>, vector<4x128xf32>, vector<16x128xf32> -> vector<16x128xf32>
    %c0_3 = arith.constant 0 : index
    %c0_4 = arith.constant 0 : index
    %3 = vector.load %arg3[%c0_3, %c0_4] : memref<1x128xf32, #tpu.memory_space<vmem>>, vector<1x128xf32>
    %4 = vector.broadcast %3 : vector<1x128xf32> to vector<16x128xf32>
    %5 = arith.addf %2, %4 : vector<16x128xf32>
    %c0_5 = arith.constant 0 : index
    %c0_6 = arith.constant 0 : index
    %6 = vector.load %arg4[%c0_5, %c0_6] : memref<16x128xf32, #tpu.memory_space<vmem>>, vector<16x128xf32>
    tpu.vector_store %arg4[%c0_5, %c0_6], %5 {strides = array<i32>} : memref<16x128xf32, #tpu.memory_space<vmem>>, vector<16x128xf32>,
    return
  }
  func.func @transform_0(%arg0: i32) -> (i32, i32) {
    %c0_i32 = arith.constant 0 : i32
    %c0_i32_0 = arith.constant 0 : i32
    return %arg0, %c0_i32 : i32, i32
  }
  func.func @transform_1(%arg0: i32) -> (i32, i32) {
    %c0_i32 = arith.constant 0 : i32
    %c0_i32_0 = arith.constant 0 : i32
    %c0_i32_1 = arith.constant 0 : i32
    return %c0_i32, %c0_i32_0 : i32, i32
  }
  func.func @transform_2(%arg0: i32) -> (i32, i32) {
    %c0_i32 = arith.constant 0 : i32
    %c0_i32_0 = arith.constant 0 : i32
    %c0_i32_1 = arith.constant 0 : i32
    return %c0_i32, %c0_i32_0 : i32, i32
  }
  func.func @transform_3(%arg0: i32) -> (i32, i32) {
    %c0_i32 = arith.constant 0 : i32
    %c0_i32_0 = arith.constant 0 : i32
    return %arg0, %c0_i32 : i32, i32
  }
}

</mosaic_0001>

<llo_original>
// kernel: patch_embedding.1
$region0: #{patch_embedding.1}
  #allocation0 [shape = 'u32[]', space=smem, size = 0x4, offset = 0x4, fixed_abs, tag = 'smem constant byte address 0x4 - core index']
  #allocation1 [shape = 'u32[144,128]{1,0:T(1,128)}', space=vmem, size = 0x12000, scoped, tag = 'internal scratch']
  %s0 = inlined_call_operand.vmem [shape: f32[16,4], index: 0, kind: input, shape index: {}]
  %s1 = inlined_call_operand.vmem [shape: f32[4,128], index: 1, kind: input, shape index: {}]
  %s2 = inlined_call_operand.vmem [shape: f32[1,128], index: 2, kind: input, shape index: {}]
  %s3 = inlined_call_operand.vmem [shape: f32[16,128], index: 3, kind: output, shape index: {}]
  %s4 = sld [smem:[#allocation0]]
  $region22: #{patch_embedding.1} parent=0
    _
  %s6 = ssub.s32 1, %s4
  %s7 = scalar_select 0, %s6, %s4
  // Predicated region
  $region2: #{patch_embedding.1} parent=0 // pred_check
    _
  $region3: #{patch_embedding.1} parent=0 // pred_check_branch
    %9 = sbr.rel (0) target = $region5
  $region4: #{patch_embedding.1} parent=0 // pred_region
    _
  $region5: #{patch_embedding.1} parent=0 // pred_fallthru
    _
  // Predicated region
  $region6: #{patch_embedding.1} parent=0 // pred_check
    _
  $region7: #{patch_embedding.1} parent=0 // pred_check_branch
    %11 = sbr.rel (0) target = $region9
  $region8: #{patch_embedding.1} parent=0 // pred_region
    _
  $region9: #{patch_embedding.1} parent=0 // pred_fallthru
    _
  // Predicated region
  $region10: #{patch_embedding.1} parent=0 // pred_check
    _
  $region11: #{patch_embedding.1} parent=0 // pred_check_branch
    %13 = sbr.rel (0) target = $region13
  $region12: #{patch_embedding.1} parent=0 // pred_region
    _
  $region13: #{patch_embedding.1} parent=0 // pred_fallthru
    _
  %v14 = vld [vmem:[%s0] sm:$0xff]
  %v15 = vld [vmem:[%s0 + $0x8] sm:$0xff]
  %v16 = vld [vmem:[%s1] sm:$0xf]
  %v17 = vld [vmem:[%s2] sm:$0x1]
  %v19 = vlaneseq
  %v20 = vshrl.u32 %v19, 7
  %v21 = vsub.s32 0, %v20
  %v22 = vrot.slane %v17, %v21
  %vm24 = vcmask 31744
  %v26 = vsel %vm24, %v14, 0
  %v29 = vsel %vm24, %v15, 0
  %vm31 = vcmask 1043456
  %v33 = vsel %vm31, %v16, 0
  %35 = vmatprep.subr.mxu0 0.0
  %36 = vmatpush1.msra.mxu0 %v33
  %37 = vmatprep.subr.mxu0 0.0
  %38 = vmatpush1.msra.mxu0 0.0
  %39 = vmatprep.subr.mxu0 0.0
  %40 = vmatpush1.msra.mxu0 0.0
  %41 = vmatprep.subr.mxu0 0.0
  %42 = vmatpush1.msra.mxu0 0.0
  %43 = vmatprep.subr.mxu0 0.0
  %44 = vmatpush1.msra.mxu0 0.0
  %45 = vmatprep.subr.mxu0 0.0
  %46 = vmatpush1.msra.mxu0 0.0
  %47 = vmatprep.subr.mxu0 0.0
  %48 = vmatpush1.msra.mxu0 0.0
  %49 = vmatprep.subr.mxu0 0.0
  %50 = vmatpush1.msra.mxu0 0.0
  %51 = vmatprep.subr.mxu0 0.0
  %52 = vmatpush1.msra.mxu0 0.0
  %53 = vmatprep.subr.mxu0 0.0
  %54 = vmatpush1.msra.mxu0 0.0
  %55 = vmatprep.subr.mxu0 0.0
  %56 = vmatpush1.msra.mxu0 0.0
  %57 = vmatprep.subr.mxu0 0.0
  %58 = vmatpush1.msra.mxu0 0.0
  %59 = vmatprep.subr.mxu0 0.0
  %60 = vmatpush1.msra.mxu0 0.0
  %61 = vmatprep.subr.mxu0 0.0
  %62 = vmatpush1.msra.mxu0 0.0
  %63 = vmatprep.subr.mxu0 0.0
  %64 = vmatpush1.msra.mxu0 0.0
  %65 = vmatprep.subr.mxu0 0.0
  %66 = vmatpush1.msra.mxu0 0.0
  %67 = vmatprep.subr.mxu0 0.0
  %68 = vmatpush1.msra.mxu0 0.0
  %69 = vmatprep.subr.mxu0 0.0
  %70 = vmatpush1.msra.mxu0 0.0
  %71 = vmatprep.subr.mxu0 0.0
  %72 = vmatpush1.msra.mxu0 0.0
  %73 = vmatprep.subr.mxu0 0.0
  %74 = vmatpush1.msra.mxu0 0.0
  %75 = vmatprep.subr.mxu0 0.0
  %76 = vmatpush1.msra.mxu0 0.0
  %77 = vmatprep.subr.mxu0 0.0
  %78 = vmatpush1.msra.mxu0 0.0
  %79 = vmatprep.subr.mxu0 0.0
  %80 = vmatpush1.msra.mxu0 0.0
  %81 = vmatprep.subr.mxu0 0.0
  %82 = vmatpush1.msra.mxu0 0.0
  %83 = vmatprep.subr.mxu0 0.0
  %84 = vmatpush1.msra.mxu0 0.0
  %85 = vmatprep.subr.mxu0 0.0
  %86 = vmatpush1.msra.mxu0 0.0
  %87 = vmatprep.subr.mxu0 0.0
  %88 = vmatpush1.msra.mxu0 0.0
  %89 = vmatprep.subr.mxu0 0.0
  %90 = vmatpush1.msra.mxu0 0.0
  %91 = vmatprep.subr.mxu0 0.0
  %92 = vmatpush1.msra.mxu0 0.0
  %93 = vmatprep.subr.mxu0 0.0
  %94 = vmatpush1.msra.mxu0 0.0
  %95 = vmatprep.subr.mxu0 0.0
  %96 = vmatpush1.msra.mxu0 0.0
  %97 = vmatprep.subr.mxu0 0.0
  %98 = vmatpush1.msra.mxu0 0.0
  %99 = vmatprep.mubr.f32.mxu0 0.0
  %100 = vmatmul.mubr.f32.gmra.mrb[0].mxu0 %v26
  %v101 = vpop.f32.mrb[0].mxu0
  %v102 = vadd.f32 %v22, %v101
  %v103 = vpop.f32.mrb[0].mxu0
  %104 = vmatprep.mubr.f32.mxu0 0.0
  %105 = vmatmul.mubr.f32.gmra.mrb[0].mxu0 %v29
  %v106 = vpop.f32.mrb[0].mxu0
  %v107 = vadd.f32 %v22, %v106
  %v108 = vpop.f32.mrb[0].mxu0
  %109 = vdwg.mxu0
  %110 = vst [vmem:[%s3] sm:$0xff] %v102
  %111 = vst [vmem:[%s3 + $0x8] sm:$0xff] %v107
  // Predicated region
  $region14: #{patch_embedding.1} parent=0 // pred_check
    _
  $region15: #{patch_embedding.1} parent=0 // pred_check_branch
    %113 = sbr.rel (0) target = $region17
  $region16: #{patch_embedding.1} parent=0 // pred_region
    _
  $region17: #{patch_embedding.1} parent=0 // pred_fallthru
    _
  // Predicated region
  $region18: #{patch_embedding.1} parent=0 // pred_check
    _
  $region19: #{patch_embedding.1} parent=0 // pred_check_branch
    %115 = sbr.rel (0) target = $region21
  $region20: #{patch_embedding.1} parent=0 // pred_region
    _
  $region21: #{patch_embedding.1} parent=0 // pred_fallthru
    _

// kernel: patch_embedding.1
$region0: #{patch_embedding.1}
  #allocation0 [shape = 'u32[]', space=smem, size = 0x4, offset = 0x4, fixed_abs, tag = 'smem constant byte address 0x4 - core index']
  #allocation1 [shape = 'u32[144,128]{1,0:T(1,128)}', space=vmem, size = 0x12000, scoped, tag = 'internal scratch']
  %s0 = inlined_call_operand.vmem [shape: f32[16,4], index: 0, kind: input, shape index: {}]
  %s1 = inlined_call_operand.vmem [shape: f32[4,128], index: 1, kind: input, shape index: {}]
  %s2 = inlined_call_operand.vmem [shape: f32[1,128], index: 2, kind: input, shape index: {}]
  %s3 = inlined_call_operand.vmem [shape: f32[16,128], index: 3, kind: output, shape index: {}]
  %s4 = sld [smem:[#allocation0]]
  $region22: #{patch_embedding.1} parent=0
    _
  %s6 = ssub.s32 1, %s4
  %s7 = scalar_select 0, %s6, %s4
  // Predicated region
  $region2: #{patch_embedding.1} parent=0 // pred_check
    _
  $region3: #{patch_embedding.1} parent=0 // pred_check_branch
    %9 = sbr.rel (0) target = $region5
  $region4: #{patch_embedding.1} parent=0 // pred_region
    _
  $region5: #{patch_embedding.1} parent=0 // pred_fallthru
    _
  // Predicated region
  $region6: #{patch_embedding.1} parent=0 // pred_check
    _
  $region7: #{patch_embedding.1} parent=0 // pred_check_branch
    %11 = sbr.rel (0) target = $region9
  $region8: #{patch_embedding.1} parent=0 // pred_region
    _
  $region9: #{patch_embedding.1} parent=0 // pred_fallthru
    _
  // Predicated region
  $region10: #{patch_embedding.1} parent=0 // pred_check
    _
  $region11: #{patch_embedding.1} parent=0 // pred_check_branch
    %13 = sbr.rel (0) target = $region13
  $region12: #{patch_embedding.1} parent=0 // pred_region
    _
  $region13: #{patch_embedding.1} parent=0 // pred_fallthru
    _
  %v14 = vld [vmem:[%s0] sm:$0xff]
  %v15 = vld [vmem:[%s0 + $0x8] sm:$0xff]
  %v16 = vld [vmem:[%s1] sm:$0xf]
  %v17 = vld [vmem:[%s2] sm:$0x1]
  %v19 = vlaneseq
  %v20 = vshrl.u32 %v19, 7
  %v21 = vsub.s32 0, %v20
  %v22 = vrot.slane %v17, %v21
  %vm24 = vcmask 31744
  %v26 = vsel %vm24, %v14, 0
  %v29 = vsel %vm24, %v15, 0
  %vm31 = vcmask 1043456
  %v33 = vsel %vm31, %v16, 0
  %35 = vmatprep.subr.mxu0 0.0
  %36 = vmatpush1.msra.mxu0 %v33
  %37 = vmatprep.subr.mxu0 0.0
  %38 = vmatpush1.msra.mxu0 0.0
  %39 = vmatprep.subr.mxu0 0.0
  %40 = vmatpush1.msra.mxu0 0.0
  %41 = vmatprep.subr.mxu0 0.0
  %42 = vmatpush1.msra.mxu0 0.0
  %43 = vmatprep.subr.mxu0 0.0
  %44 = vmatpush1.msra.mxu0 0.0
  %45 = vmatprep.subr.mxu0 0.0
  %46 = vmatpush1.msra.mxu0 0.0
  %47 = vmatprep.subr.mxu0 0.0
  %48 = vmatpush1.msra.mxu0 0.0
  %49 = vmatprep.subr.mxu0 0.0
  %50 = vmatpush1.msra.mxu0 0.0
  %51 = vmatprep.subr.mxu0 0.0
  %52 = vmatpush1.msra.mxu0 0.0
  %53 = vmatprep.subr.mxu0 0.0
  %54 = vmatpush1.msra.mxu0 0.0
  %55 = vmatprep.subr.mxu0 0.0
  %56 = vmatpush1.msra.mxu0 0.0
  %57 = vmatprep.subr.mxu0 0.0
  %58 = vmatpush1.msra.mxu0 0.0
  %59 = vmatprep.subr.mxu0 0.0
  %60 = vmatpush1.msra.mxu0 0.0
  %61 = vmatprep.subr.mxu0 0.0
  %62 = vmatpush1.msra.mxu0 0.0
  %63 = vmatprep.subr.mxu0 0.0
  %64 = vmatpush1.msra.mxu0 0.0
  %65 = vmatprep.subr.mxu0 0.0
  %66 = vmatpush1.msra.mxu0 0.0
  %67 = vmatprep.subr.mxu0 0.0
  %68 = vmatpush1.msra.mxu0 0.0
  %69 = vmatprep.subr.mxu0 0.0
  %70 = vmatpush1.msra.mxu0 0.0
  %71 = vmatprep.subr.mxu0 0.0
  %72 = vmatpush1.msra.mxu0 0.0
  %73 = vmatprep.subr.mxu0 0.0
  %74 = vmatpush1.msra.mxu0 0.0
  %75 = vmatprep.subr.mxu0 0.0
  %76 = vmatpush1.msra.mxu0 0.0
  %77 = vmatprep.subr.mxu0 0.0
  %78 = vmatpush1.msra.mxu0 0.0
  %79 = vmatprep.subr.mxu0 0.0
  %80 = vmatpush1.msra.mxu0 0.0
  %81 = vmatprep.subr.mxu0 0.0
  %82 = vmatpush1.msra.mxu0 0.0
  %83 = vmatprep.subr.mxu0 0.0
  %84 = vmatpush1.msra.mxu0 0.0
  %85 = vmatprep.subr.mxu0 0.0
  %86 = vmatpush1.msra.mxu0 0.0
  %87 = vmatprep.subr.mxu0 0.0
  %88 = vmatpush1.msra.mxu0 0.0
  %89 = vmatprep.subr.mxu0 0.0
  %90 = vmatpush1.msra.mxu0 0.0
  %91 = vmatprep.subr.mxu0 0.0
  %92 = vmatpush1.msra.mxu0 0.0
  %93 = vmatprep.subr.mxu0 0.0
  %94 = vmatpush1.msra.mxu0 0.0
  %95 = vmatprep.subr.mxu0 0.0
  %96 = vmatpush1.msra.mxu0 0.0
  %97 = vmatprep.subr.mxu0 0.0
  %98 = vmatpush1.msra.mxu0 0.0
  %99 = vmatprep.mubr.f32.mxu0 0.0
  %100 = vmatmul.mubr.f32.gmra.mrb[0].mxu0 %v26
  %v101 = vpop.f32.mrb[0].mxu0
  %v102 = vadd.f32 %v22, %v101
  %v103 = vpop.f32.mrb[0].mxu0
  %104 = vmatprep.mubr.f32.mxu0 0.0
  %105 = vmatmul.mubr.f32.gmra.mrb[0].mxu0 %v29
  %v106 = vpop.f32.mrb[0].mxu0
  %v107 = vadd.f32 %v22, %v106
  %v108 = vpop.f32.mrb[0].mxu0
  %109 = vdwg.mxu0
  %110 = vst [vmem:[%s3] sm:$0xff] %v102
  %111 = vst [vmem:[%s3 + $0x8] sm:$0xff] %v107
  // Predicated region
  $region14: #{patch_embedding.1} parent=0 // pred_check
    _
  $region15: #{patch_embedding.1} parent=0 // pred_check_branch
    %113 = sbr.rel (0) target = $region17
  $region16: #{patch_embedding.1} parent=0 // pred_region
    _
  $region17: #{patch_embedding.1} parent=0 // pred_fallthru
    _
  // Predicated region
  $region18: #{patch_embedding.1} parent=0 // pred_check
    _
  $region19: #{patch_embedding.1} parent=0 // pred_check_branch
    %115 = sbr.rel (0) target = $region21
  $region20: #{patch_embedding.1} parent=0 // pred_region
    _
  $region21: #{patch_embedding.1} parent=0 // pred_fallthru
    _

</llo_original>
